<compile_context>
chip_gen: v7x
topology: tpu7x:2x2x1
jax: 0.10.0
libtpu: 0.0.40
codegen_flags: <defaults>
</compile_context>

<pallas_src>
import functools

import jax
import jax.numpy as jnp
from jax.experimental import pallas as pl
from jax.experimental.pallas import tpu as pltpu


_INV_SQRT2 = 0.7071067811865476
_SQRT_2_OVER_PI = 0.7978845608028654


def _gelu_exact(x):
    # PyTorch nn.GELU() default = exact erf formulation.
    return 0.5 * x * (1.0 + jax.lax.erf(x * _INV_SQRT2))


def _gelu_tanh(x):
    # tanh approximation — transcendental goes to the EUP slot.
    return 0.5 * x * (1.0 + jnp.tanh(_SQRT_2_OVER_PI * (x + 0.044715 * x * x * x)))


def _round_up(n, m):
    return ((n + m - 1) // m) * m


def residual_block_kernel(x_ref, w1t_ref, b1_ref, w2t_ref, b2_ref, o_ref,
                          *, approximate):
    act = _gelu_tanh if approximate else _gelu_exact

    x = x_ref[...].astype(jnp.float32)

    # fc1 (+ bias) + GELU — f32 accumulation on the MXU.
    h = jnp.dot(x, w1t_ref[...], preferred_element_type=jnp.float32)
    h = act(h + b1_ref[...])

    # fc2 (+ bias) + residual + GELU.
    y = jnp.dot(h, w2t_ref[...], preferred_element_type=jnp.float32)
    y = act(y + b2_ref[...] + x)

    o_ref[...] = y.astype(o_ref.dtype)


def residual_block(x, w1, b1, w2, b2, *, tm=8192, approximate=False):
    """x: (..., F). PyTorch Linear layout: w1 (H, F), b1 (H,), w2 (F, H), b2 (F,)."""
    orig_shape = x.shape
    F = orig_shape[-1]
    H, F1 = w1.shape
    assert F1 == F, f"fc1 weight expected (H, {F}), got {w1.shape}"
    assert w2.shape == (F, H), f"fc2 weight expected ({F}, {H}), got {w2.shape}"
    assert b1.shape == (H,) and b2.shape == (F,)

    x2d = x.reshape(-1, F)
    M = x2d.shape[0]

    # ---- Lane packing: group P logical rows per packed row so the feature
    #      axis is 128 lanes wide (lane-dense I/O, K=128 / N=P*H matmuls). ----
    P = 128 // F if (F < 128 and 128 % F == 0) else 1

    pad_rows = (-M) % P                    # at most P-1 (<=3) rows; usually 0
    if pad_rows:
        x2d = jnp.pad(x2d, ((0, pad_rows), (0, 0)))
    Mp = M + pad_rows
    Mk = Mp // P                           # packed row count
    Fp = P * F                             # packed lane width (128 when packed)
    Hp = P * H

    x_packed = x2d.reshape(Mk, Fp)         # free row-major reshape

    # Block-diagonal packed weights / lane-tiled biases (tiny; built once).
    w1t = w1.T.astype(jnp.float32)         # (F, H)
    w2t = w2.T.astype(jnp.float32)         # (H, F)
    if P > 1:
        w1t_p = jax.scipy.linalg.block_diag(*([w1t] * P))        # (Fp, Hp)
        w2t_p = jax.scipy.linalg.block_diag(*([w2t] * P))        # (Hp, Fp)
        b1_p = jnp.tile(b1.astype(jnp.float32), P).reshape(1, Hp)
        b2_p = jnp.tile(b2.astype(jnp.float32), P).reshape(1, Fp)
    else:
        w1t_p, w2t_p = w1t, w2t
        b1_p = b1.astype(jnp.float32).reshape(1, Hp)
        b2_p = b2.astype(jnp.float32).reshape(1, Fp)

    # ---- Tile sizing over packed rows ----
    if Mk <= 8:
        tm_eff = Mk                        # single full-extent block
        grid_m = 1
    else:
        tgt = max(8, (tm // P) // 8 * 8)   # target tile (packed rows, mult of 8)
        half = _round_up(pl.cdiv(Mk, 2), 8)  # keep >=2 grid steps (v7x: 2 TCs)
        tm_eff = min(tgt, half)
        grid_m = pl.cdiv(Mk, tm_eff)       # ragged last tile handled by masking

    kernel = functools.partial(residual_block_kernel, approximate=approximate)

    out_packed = pl.pallas_call(
        kernel,
        out_shape=jax.ShapeDtypeStruct((Mk, Fp), x.dtype),
        grid_spec=pltpu.PrefetchScalarGridSpec(
            num_scalar_prefetch=0,
            grid=(grid_m,),
            in_specs=[
                pl.BlockSpec((tm_eff, Fp), lambda i: (i, 0)),   # x row tile
                pl.BlockSpec((Fp, Hp), lambda i: (0, 0)),       # fc1 weight (resident)
                pl.BlockSpec((1, Hp), lambda i: (0, 0)),        # fc1 bias
                pl.BlockSpec((Hp, Fp), lambda i: (0, 0)),       # fc2 weight (resident)
                pl.BlockSpec((1, Fp), lambda i: (0, 0)),        # fc2 bias
            ],
            out_specs=pl.BlockSpec((tm_eff, Fp), lambda i: (i, 0)),
        ),
        compiler_params=pltpu.CompilerParams(
            dimension_semantics=("parallel",),
        ),
    )(x_packed, w1t_p, b1_p, w2t_p, b2_p)

    out2d = out_packed.reshape(Mp, F)
    if pad_rows:
        out2d = out2d[:M]
    return out2d.reshape(orig_shape)


def _reference(x, w1, b1, w2, b2, act=_gelu_exact):
    h = act(x @ w1.T + b1)
    return act(h @ w2.T + b2 + x)


if __name__ == "__main__":
    batch, seq, in_features, hidden_features = 2, 8, 32, 64

    key = jax.random.PRNGKey(0)
    kx, kw1, kb1, kw2, kb2, kx2 = jax.random.split(key, 6)

    x = jax.random.normal(kx, (batch, seq, in_features), dtype=jnp.float32)

    # Deterministic synthetic params (PyTorch Linear shapes: W (out,in), b (out,))
    bound1 = 1.0 / (in_features ** 0.5)
    bound2 = 1.0 / (hidden_features ** 0.5)
    w1 = jax.random.uniform(kw1, (hidden_features, in_features), jnp.float32,
                            -bound1, bound1)
    b1 = jax.random.uniform(kb1, (hidden_features,), jnp.float32, -bound1, bound1)
    w2 = jax.random.uniform(kw2, (in_features, hidden_features), jnp.float32,
                            -bound2, bound2)
    b2 = jax.random.uniform(kb2, (in_features,), jnp.float32, -bound2, bound2)

    # 1) Exact-erf path (matches PyTorch nn.GELU default semantics).
    out = jax.block_until_ready(residual_block(x, w1, b1, w2, b2))
    ref = _reference(x, w1, b1, w2, b2, act=_gelu_exact)
    assert out.shape == x.shape
    assert jnp.allclose(out, ref, atol=1e-5, rtol=1e-5), (
        f"max abs err {jnp.max(jnp.abs(out - ref))}")

    # 2) EUP-friendly tanh path (perf mode) vs matching tanh reference.
    out_t = jax.block_until_ready(
        residual_block(x, w1, b1, w2, b2, approximate=True))
    ref_t = _reference(x, w1, b1, w2, b2, act=_gelu_tanh)
    assert jnp.allclose(out_t, ref_t, atol=1e-5, rtol=1e-5), (
        f"max abs err {jnp.max(jnp.abs(out_t - ref_t))}")

    # 3) Ragged / multi-tile case: exercises the P-alignment pad and a grid
    #    with >1 step whose last tile is masked.
    x2 = jax.random.normal(kx2, (1, 77, in_features), dtype=jnp.float32)
    out2 = jax.block_until_ready(residual_block(x2, w1, b1, w2, b2))
    ref2 = _reference(x2, w1, b1, w2, b2, act=_gelu_exact)
    assert out2.shape == x2.shape
    assert jnp.allclose(out2, ref2, atol=1e-5, rtol=1e-5), (
        f"max abs err {jnp.max(jnp.abs(out2 - ref2))}")

    print("KERNEL_OK")
</pallas_src>

<mosaic_0001>
module attributes {stable_mosaic.version = 11 : i64} {
  func.func @residual_block_kernel(%arg0: i32, %arg1: memref<4x128xf32, #tpu.memory_space<vmem>>, %arg2: memref<128x256xf32, #tpu.memory_space<vmem>>, %arg3: memref<1x256xf32, #tpu.memory_space<vmem>>, %arg4: memref<256x128xf32, #tpu.memory_space<vmem>>, %arg5: memref<1x128xf32, #tpu.memory_space<vmem>>, %arg6: memref<4x128xf32, #tpu.memory_space<vmem>>) attributes {dimension_semantics = [#tpu.dimension_semantics<parallel>], iteration_bounds = array<i64: 1>, scalar_prefetch = 0 : i64, scratch_operands = 0 : i64, tpu.core_type = #tpu.core_type<tc>, window_params = [{transform_indices = @transform_0, window_bounds = array<i64: 4, 128>}, {pipeline_mode = #tpu.pipeline_mode<synchronous>, transform_indices = @transform_1, window_bounds = array<i64: 128, 256>}, {pipeline_mode = #tpu.pipeline_mode<synchronous>, transform_indices = @transform_2, window_bounds = array<i64: 1, 256>}, {pipeline_mode = #tpu.pipeline_mode<synchronous>, transform_indices = @transform_3, window_bounds = array<i64: 256, 128>}, {pipeline_mode = #tpu.pipeline_mode<synchronous>, transform_indices = @transform_4, window_bounds = array<i64: 1, 128>}, {transform_indices = @transform_5, window_bounds = array<i64: 4, 128>}]} {
    %c0 = arith.constant 0 : index
    %c0_0 = arith.constant 0 : index
    %0 = vector.load %arg1[%c0, %c0_0] : memref<4x128xf32, #tpu.memory_space<vmem>>, vector<4x128xf32>
    %c0_1 = arith.constant 0 : index
    %c0_2 = arith.constant 0 : index
    %1 = vector.load %arg2[%c0_1, %c0_2] : memref<128x256xf32, #tpu.memory_space<vmem>>, vector<128x256xf32>
    %cst = arith.constant dense<0.000000e+00> : vector<4x256xf32>
    %2 = tpu.matmul %0, %1, %cst {dimension_numbers = #tpu.dot_dimension_numbers<[1], [0], [0], [1], [0, 0, 1, 1], [], []>} : vector<4x128xf32>, vector<128x256xf32>, vector<4x256xf32> -> vector<4x256xf32>
    %c0_3 = arith.constant 0 : index
    %c0_4 = arith.constant 0 : index
    %3 = vector.load %arg3[%c0_3, %c0_4] : memref<1x256xf32, #tpu.memory_space<vmem>>, vector<1x256xf32>
    %4 = vector.broadcast %3 : vector<1x256xf32> to vector<4x256xf32>
    %5 = arith.addf %2, %4 : vector<4x256xf32>
    %cst_5 = arith.constant 5.000000e-01 : f32
    %6 = vector.broadcast %cst_5 : f32 to vector<4x256xf32>
    %7 = arith.mulf %6, %5 : vector<4x256xf32>
    %cst_6 = arith.constant 0.707106769 : f32
    %8 = vector.broadcast %cst_6 : f32 to vector<4x256xf32>
    %9 = arith.mulf %5, %8 : vector<4x256xf32>
    %10 = math.erf %9 : vector<4x256xf32>
    %cst_7 = arith.constant 1.000000e+00 : f32
    %11 = vector.broadcast %cst_7 : f32 to vector<4x256xf32>
    %12 = arith.addf %11, %10 : vector<4x256xf32>
    %13 = arith.mulf %7, %12 : vector<4x256xf32>
    %c0_8 = arith.constant 0 : index
    %c0_9 = arith.constant 0 : index
    %14 = vector.load %arg4[%c0_8, %c0_9] : memref<256x128xf32, #tpu.memory_space<vmem>>, vector<256x128xf32>
    %cst_10 = arith.constant dense<0.000000e+00> : vector<4x128xf32>
    %15 = tpu.matmul %13, %14, %cst_10 {dimension_numbers = #tpu.dot_dimension_numbers<[1], [0], [0], [1], [0, 0, 1, 1], [], []>} : vector<4x256xf32>, vector<256x128xf32>, vector<4x128xf32> -> vector<4x128xf32>
    %c0_11 = arith.constant 0 : index
    %c0_12 = arith.constant 0 : index
    %16 = vector.load %arg5[%c0_11, %c0_12] : memref<1x128xf32, #tpu.memory_space<vmem>>, vector<1x128xf32>
    %17 = vector.broadcast %16 : vector<1x128xf32> to vector<4x128xf32>
    %18 = arith.addf %15, %17 : vector<4x128xf32>
    %19 = arith.addf %18, %0 : vector<4x128xf32>
    %cst_13 = arith.constant 5.000000e-01 : f32
    %20 = vector.broadcast %cst_13 : f32 to vector<4x128xf32>
    %21 = arith.mulf %20, %19 : vector<4x128xf32>
    %cst_14 = arith.constant 0.707106769 : f32
    %22 = vector.broadcast %cst_14 : f32 to vector<4x128xf32>
    %23 = arith.mulf %19, %22 : vector<4x128xf32>
    %24 = math.erf %23 : vector<4x128xf32>
    %cst_15 = arith.constant 1.000000e+00 : f32
    %25 = vector.broadcast %cst_15 : f32 to vector<4x128xf32>
    %26 = arith.addf %25, %24 : vector<4x128xf32>
    %27 = arith.mulf %21, %26 : vector<4x128xf32>
    %c0_16 = arith.constant 0 : index
    %c0_17 = arith.constant 0 : index
    %28 = vector.load %arg6[%c0_16, %c0_17] : memref<4x128xf32, #tpu.memory_space<vmem>>, vector<4x128xf32>
    tpu.vector_store %arg6[%c0_16, %c0_17], %27 {strides = array<i32>} : memref<4x128xf32, #tpu.memory_space<vmem>>, vector<4x128xf32>,
    return
  }
  func.func @transform_0(%arg0: i32) -> (i32, i32) {
    %c0_i32 = arith.constant 0 : i32
    %c0_i32_0 = arith.constant 0 : i32
    return %arg0, %c0_i32 : i32, i32
  }
  func.func @transform_1(%arg0: i32) -> (i32, i32) {
    %c0_i32 = arith.constant 0 : i32
    %c0_i32_0 = arith.constant 0 : i32
    %c0_i32_1 = arith.constant 0 : i32
    return %c0_i32, %c0_i32_0 : i32, i32
  }
  func.func @transform_2(%arg0: i32) -> (i32, i32) {
    %c0_i32 = arith.constant 0 : i32
    %c0_i32_0 = arith.constant 0 : i32
    %c0_i32_1 = arith.constant 0 : i32
    return %c0_i32, %c0_i32_0 : i32, i32
  }
  func.func @transform_3(%arg0: i32) -> (i32, i32) {
    %c0_i32 = arith.constant 0 : i32
    %c0_i32_0 = arith.constant 0 : i32
    %c0_i32_1 = arith.constant 0 : i32
    return %c0_i32, %c0_i32_0 : i32, i32
  }
  func.func @transform_4(%arg0: i32) -> (i32, i32) {
    %c0_i32 = arith.constant 0 : i32
    %c0_i32_0 = arith.constant 0 : i32
    %c0_i32_1 = arith.constant 0 : i32
    return %c0_i32, %c0_i32_0 : i32, i32
  }
  func.func @transform_5(%arg0: i32) -> (i32, i32) {
    %c0_i32 = arith.constant 0 : i32
    %c0_i32_0 = arith.constant 0 : i32
    return %arg0, %c0_i32 : i32, i32
  }
}

</mosaic_0001>

<llo_original>
// kernel: tpu_custom_call.1
$region0: #{tpu_custom_call.1}
  #allocation0 [shape = 'u32[]', space=smem, size = 0x4, offset = 0x4, fixed_abs, tag = 'smem constant byte address 0x4 - core index']
  #allocation1 [shape = 'u32[144,128]{1,0:T(1,128)}', space=vmem, size = 0x12000, scoped, tag = 'internal scratch']
  %s0 = inlined_call_operand.hbm [shape: f32[4,128], index: 0, kind: input, shape index: {}]
  %s1 = inlined_call_operand.hbm [shape: f32[128,256], index: 1, kind: input, shape index: {}]
  %s2 = inlined_call_operand.vmem [shape: f32[1,256], index: 2, kind: input, shape index: {}]
  %s3 = inlined_call_operand.hbm [shape: f32[256,128], index: 3, kind: input, shape index: {}]
  %s4 = inlined_call_operand.vmem [shape: f32[1,128], index: 4, kind: input, shape index: {}]
  %s5 = inlined_call_operand.hbm [shape: f32[4,128], index: 5, kind: output, shape index: {}]
  %s6 = sld [smem:[#allocation0]]
  $region42: #{tpu_custom_call.1} parent=0
    _
  %s8 = ssub.s32 1, %s6
  %s9 = scalar_select 0, %s8, %s6
  $region1: #{tpu_custom_call.1} parent=0
    #allocation2 [shape = 'u8[2048]{0}', space=vmem, size = 0x800, scoped, tag = 'input window, operand 0, single buffered']
    #allocation3 [shape = 's32[1]{0}', space=sflag, size = 0x4, scoped, tag = 'scoped memory for tpu_custom_call.1']
    #allocation4 [shape = 's32[1]{0}', space=sflag, size = 0x4, scoped, tag = 'scoped memory for tpu_custom_call.1']
    #allocation5 [shape = 'u8[131072]{0}', space=vmem, size = 0x20000, scoped, tag = 'input window, operand 1, single buffered']
    #allocation6 [shape = 's32[1]{0}', space=sflag, size = 0x4, scoped, tag = 'scoped memory for tpu_custom_call.1']
    #allocation7 [shape = 'u8[131072]{0}', space=vmem, size = 0x20000, scoped, tag = 'input window, operand 3, single buffered']
    #allocation8 [shape = 'u8[2048]{0}', space=vmem, size = 0x800, scoped, tag = 'output window, operand 0, single buffered']
    %10 = vsyncpa [#allocation3], 0
    %11 = vsyncpa [#allocation6], 0
    %12 = vsyncpa [#allocation4], 0
    // Predicated region
    $region2: #{tpu_custom_call.1} parent=1 // pred_check
      _
    $region3: #{tpu_custom_call.1} parent=1 // pred_check_branch
      %14 = sbr.rel (0) target = $region5
    $region4: #{tpu_custom_call.1} parent=1 // pred_region
      %s16 = ssub.s32 64, 64
      %17 = vsyncadd [#allocation3], %s16
      %s19 = sshll.u32 [#allocation2], 4
      %s20 = int_to_ptr.vmem [resolvable:$true] %s19
      %22 = dma.hbm_to_vmem [thread:$0]  %s0, 64, %s20, [#allocation3]
    $region5: #{tpu_custom_call.1} parent=1 // pred_fallthru
      _
    // Predicated region
    $region6: #{tpu_custom_call.1} parent=1 // pred_check
      _
    $region7: #{tpu_custom_call.1} parent=1 // pred_check_branch
      %24 = sbr.rel (0) target = $region9
    $region8: #{tpu_custom_call.1} parent=1 // pred_region
      %s26 = ssub.s32 4096, 4096
      %27 = vsyncadd [#allocation6], %s26
      %s28 = sshll.u32 [#allocation5], 4
      %s29 = int_to_ptr.vmem [resolvable:$true] %s28
      %34 = dma.hbm_to_vmem [thread:$0]  %s1, 4096, %s29, [#allocation6], 256, 256, 16
    $region9: #{tpu_custom_call.1} parent=1 // pred_fallthru
      _
    // Predicated region
    $region10: #{tpu_custom_call.1} parent=1 // pred_check
      _
    $region11: #{tpu_custom_call.1} parent=1 // pred_check_branch
      %36 = sbr.rel (0) target = $region13
    $region12: #{tpu_custom_call.1} parent=1 // pred_region
      _
    $region13: #{tpu_custom_call.1} parent=1 // pred_fallthru
      _
    // Predicated region
    $region14: #{tpu_custom_call.1} parent=1 // pred_check
      _
    $region15: #{tpu_custom_call.1} parent=1 // pred_check_branch
      %38 = sbr.rel (0) target = $region17
    $region16: #{tpu_custom_call.1} parent=1 // pred_region
      %s40 = ssub.s32 4096, 4096
      %41 = vsyncadd [#allocation6], %s40
      %s42 = sshll.u32 [#allocation7], 4
      %s43 = int_to_ptr.vmem [resolvable:$true] %s42
      %48 = dma.hbm_to_vmem [thread:$0]  %s3, 4096, %s43, [#allocation6], 128, 128, 8
    $region17: #{tpu_custom_call.1} parent=1 // pred_fallthru
      _
    // Predicated region
    $region18: #{tpu_custom_call.1} parent=1 // pred_check
      _
    $region19: #{tpu_custom_call.1} parent=1 // pred_check_branch
      %50 = sbr.rel (0) target = $region21
    $region20: #{tpu_custom_call.1} parent=1 // pred_region
      _
    $region21: #{tpu_custom_call.1} parent=1 // pred_fallthru
      _
    // Predicated region
    $region22: #{tpu_custom_call.1} parent=1 // pred_check
      _
    $region23: #{tpu_custom_call.1} parent=1 // pred_check_branch
      %52 = sbr.rel (0) target = $region25
    $region24: #{tpu_custom_call.1} parent=1 // pred_region
      %53 = dma.done [#allocation3], 64
    $region25: #{tpu_custom_call.1} parent=1 // pred_fallthru
      _
    // Predicated region
    $region26: #{tpu_custom_call.1} parent=1 // pred_check
      _
    $region27: #{tpu_custom_call.1} parent=1 // pred_check_branch
      %55 = sbr.rel (0) target = $region29
    $region28: #{tpu_custom_call.1} parent=1 // pred_region
      %56 = dma.done [#allocation6], 4096
    $region29: #{tpu_custom_call.1} parent=1 // pred_fallthru
      _
    // Predicated region
    $region30: #{tpu_custom_call.1} parent=1 // pred_check
      _
    $region31: #{tpu_custom_call.1} parent=1 // pred_check_branch
      %58 = sbr.rel (0) target = $region33
    $region32: #{tpu_custom_call.1} parent=1 // pred_region
      %59 = dma.done [#allocation6], 4096
    $region33: #{tpu_custom_call.1} parent=1 // pred_fallthru
      _
    %v60 = vld [vmem:[#allocation2] sm:$0xf]
    %v61 = vld [vmem:[#allocation5] sm:$0xff]
    %v62 = vld [vmem:[#allocation5 + $0x8] sm:$0xff]
    %v63 = vld [vmem:[#allocation5 + $0x10] sm:$0xff]
    %v64 = vld [vmem:[#allocation5 + $0x18] sm:$0xff]
    %v65 = vld [vmem:[#allocation5 + $0x20] sm:$0xff]
    %v66 = vld [vmem:[#allocation5 + $0x28] sm:$0xff]
    %v67 = vld [vmem:[#allocation5 + $0x30] sm:$0xff]
    %v68 = vld [vmem:[#allocation5 + $0x38] sm:$0xff]
    %v69 = vld [vmem:[#allocation5 + $0x40] sm:$0xff]
    %v70 = vld [vmem:[#allocation5 + $0x48] sm:$0xff]
    %v71 = vld [vmem:[#allocation5 + $0x50] sm:$0xff]
    %v72 = vld [vmem:[#allocation5 + $0x58] sm:$0xff]
    %v73 = vld [vmem:[#allocation5 + $0x60] sm:$0xff]
    %v74 = vld [vmem:[#allocation5 + $0x68] sm:$0xff]
    %v75 = vld [vmem:[#allocation5 + $0x70] sm:$0xff]
    %v76 = vld [vmem:[#allocation5 + $0x78] sm:$0xff]
    %v77 = vld [vmem:[#allocation5 + $0x80] sm:$0xff]
    %v78 = vld [vmem:[#allocation5 + $0x88] sm:$0xff]
    %v79 = vld [vmem:[#allocation5 + $0x90] sm:$0xff]
    %v80 = vld [vmem:[#allocation5 + $0x98] sm:$0xff]
    %v81 = vld [vmem:[#allocation5 + $0xa0] sm:$0xff]
    %v82 = vld [vmem:[#allocation5 + $0xa8] sm:$0xff]
    %v83 = vld [vmem:[#allocation5 + $0xb0] sm:$0xff]
    %v84 = vld [vmem:[#allocation5 + $0xb8] sm:$0xff]
    %v85 = vld [vmem:[#allocation5 + $0xc0] sm:$0xff]
    %v86 = vld [vmem:[#allocation5 + $0xc8] sm:$0xff]
    %v87 = vld [vmem:[#allocation5 + $0xd0] sm:$0xff]
    %v88 = vld [vmem:[#allocation5 + $0xd8] sm:$0xff]
    %v89 = vld [vmem:[#allocation5 + $0xe0] sm:$0xff]
    %v90 = vld [vmem:[#allocation5 + $0xe8] sm:$0xff]
    %v91 = vld [vmem:[#allocation5 + $0xf0] sm:$0xff]
    %v92 = vld [vmem:[#allocation5 + $0xf8] sm:$0xff]
    %v93 = vld [vmem:[%s2] sm:$0x3]
    %v95 = vlaneseq
    %v96 = vshrl.u32 %v95, 7
    %v97 = vsub.s32 0, %v96
    %v98 = vrot.slane %v93, %v97
    %v99 = vlaneseq
    %v100 = vshrl.u32 %v99, 7
    %v101 = vsub.s32 1, %v100
    %v102 = vrot.slane %v93, %v101
    %105 = vmatprep.subr.mxu0 %v62
    %106 = vmatpush1.msra.mxu0 %v61
    %107 = vmatprep.subr.mxu0 %v64
    %108 = vmatpush1.msra.mxu0 %v63
    %109 = vmatprep.subr.mxu0 %v66
    %110 = vmatpush1.msra.mxu0 %v65
    %111 = vmatprep.subr.mxu0 %v68
    %112 = vmatpush1.msra.mxu0 %v67
    %113 = vmatprep.subr.mxu0 %v70
    %114 = vmatpush1.msra.mxu0 %v69
    %115 = vmatprep.subr.mxu0 %v72
    %116 = vmatpush1.msra.mxu0 %v71
    %117 = vmatprep.subr.mxu0 %v74
    %118 = vmatpush1.msra.mxu0 %v73
    %119 = vmatprep.subr.mxu0 %v76
    %120 = vmatpush1.msra.mxu0 %v75
    %121 = vmatprep.subr.mxu0 %v78
    %122 = vmatpush1.msra.mxu0 %v77
    %123 = vmatprep.subr.mxu0 %v80
    %124 = vmatpush1.msra.mxu0 %v79
    %125 = vmatprep.subr.mxu0 %v82
    %126 = vmatpush1.msra.mxu0 %v81
    %127 = vmatprep.subr.mxu0 %v84
    %128 = vmatpush1.msra.mxu0 %v83
    %129 = vmatprep.subr.mxu0 %v86
    %130 = vmatpush1.msra.mxu0 %v85
    %131 = vmatprep.subr.mxu0 %v88
    %132 = vmatpush1.msra.mxu0 %v87
    %133 = vmatprep.subr.mxu0 %v90
    %134 = vmatpush1.msra.mxu0 %v89
    %135 = vmatprep.subr.mxu0 %v92
    %136 = vmatpush1.msra.mxu0 %v91
    %137 = vmatprep.subr.mxu0 0.0
    %138 = vmatpush1.msra.mxu0 0.0
    %139 = vmatprep.subr.mxu0 0.0
    %140 = vmatpush1.msra.mxu0 0.0
    %141 = vmatprep.subr.mxu0 0.0
    %142 = vmatpush1.msra.mxu0 0.0
    %143 = vmatprep.subr.mxu0 0.0
    %144 = vmatpush1.msra.mxu0 0.0
    %145 = vmatprep.subr.mxu0 0.0
    %146 = vmatpush1.msra.mxu0 0.0
    %147 = vmatprep.subr.mxu0 0.0
    %148 = vmatpush1.msra.mxu0 0.0
    %149 = vmatprep.subr.mxu0 0.0
    %150 = vmatpush1.msra.mxu0 0.0
    %151 = vmatprep.subr.mxu0 0.0
    %152 = vmatpush1.msra.mxu0 0.0
    %153 = vmatprep.subr.mxu0 0.0
    %154 = vmatpush1.msra.mxu0 0.0
    %155 = vmatprep.subr.mxu0 0.0
    %156 = vmatpush1.msra.mxu0 0.0
    %157 = vmatprep.subr.mxu0 0.0
    %158 = vmatpush1.msra.mxu0 0.0
    %159 = vmatprep.subr.mxu0 0.0
    %160 = vmatpush1.msra.mxu0 0.0
    %161 = vmatprep.subr.mxu0 0.0
    %162 = vmatpush1.msra.mxu0 0.0
    %163 = vmatprep.subr.mxu0 0.0
    %164 = vmatpush1.msra.mxu0 0.0
    %165 = vmatprep.subr.mxu0 0.0
    %166 = vmatpush1.msra.mxu0 0.0
    %167 = vmatprep.subr.mxu0 0.0
    %168 = vmatpush1.msra.mxu0 0.0
    %169 = vmatprep.mubr.f32.mxu0 0.0
    %170 = vmatmul.mubr.f32.gmra.mrb[0].mxu0 %v60
    %v171 = vpop.f32.mrb[0].mxu0
    %v172 = vadd.f32 %v98, %v171
    %v173 = vpop.f32.mrb[0].mxu0
    %v174 = vadd.f32 %v102, %v173
    %175 = vdwg.mxu0
    %v176 = vmul.f32 %v172, 0.5
    %v177 = vmul.f32 %v174, 0.5
    %v178 = vmul.f32 %v172, 0.70710677
    %v179 = vmul.f32 %v174, 0.70710677
    %v180 = verf.f32.pop %v178
    %v181 = verf.f32.pop %v179
    %v182 = vadd.f32 %v180, 1.0
    %v183 = vadd.f32 %v181, 1.0
    %v184 = vmul.f32 %v176, %v182
    %v185 = vmul.f32 %v177, %v183
    %v186 = vld [vmem:[#allocation7] sm:$0xff]
    %v187 = vld [vmem:[#allocation7 + $0x8] sm:$0xff]
    %v188 = vld [vmem:[#allocation7 + $0x10] sm:$0xff]
    %v189 = vld [vmem:[#allocation7 + $0x18] sm:$0xff]
    %v190 = vld [vmem:[#allocation7 + $0x20] sm:$0xff]
    %v191 = vld [vmem:[#allocation7 + $0x28] sm:$0xff]
    %v192 = vld [vmem:[#allocation7 + $0x30] sm:$0xff]
    %v193 = vld [vmem:[#allocation7 + $0x38] sm:$0xff]
    %v194 = vld [vmem:[#allocation7 + $0x40] sm:$0xff]
    %v195 = vld [vmem:[#allocation7 + $0x48] sm:$0xff]
    %v196 = vld [vmem:[#allocation7 + $0x50] sm:$0xff]
    %v197 = vld [vmem:[#allocation7 + $0x58] sm:$0xff]
    %v198 = vld [vmem:[#allocation7 + $0x60] sm:$0xff]
    %v199 = vld [vmem:[#allocation7 + $0x68] sm:$0xff]
    %v200 = vld [vmem:[#allocation7 + $0x70] sm:$0xff]
    %v201 = vld [vmem:[#allocation7 + $0x78] sm:$0xff]
    %v202 = vld [vmem:[#allocation7 + $0x80] sm:$0xff]
    %v203 = vld [vmem:[#allocation7 + $0x88] sm:$0xff]
    %v204 = vld [vmem:[#allocation7 + $0x90] sm:$0xff]
    %v205 = vld [vmem:[#allocation7 + $0x98] sm:$0xff]
    %v206 = vld [vmem:[#allocation7 + $0xa0] sm:$0xff]
    %v207 = vld [vmem:[#allocation7 + $0xa8] sm:$0xff]
    %v208 = vld [vmem:[#allocation7 + $0xb0] sm:$0xff]
    %v209 = vld [vmem:[#allocation7 + $0xb8] sm:$0xff]
    %v210 = vld [vmem:[#allocation7 + $0xc0] sm:$0xff]
    %v211 = vld [vmem:[#allocation7 + $0xc8] sm:$0xff]
    %v212 = vld [vmem:[#allocation7 + $0xd0] sm:$0xff]
    %v213 = vld [vmem:[#allocation7 + $0xd8] sm:$0xff]
    %v214 = vld [vmem:[#allocation7 + $0xe0] sm:$0xff]
    %v215 = vld [vmem:[#allocation7 + $0xe8] sm:$0xff]
    %v216 = vld [vmem:[#allocation7 + $0xf0] sm:$0xff]
    %v217 = vld [vmem:[#allocation7 + $0xf8] sm:$0xff]
    %v218 = vld [vmem:[%s4] sm:$0x1]
    %v220 = vlaneseq
    %v221 = vshrl.u32 %v220, 7
    %v222 = vsub.s32 0, %v221
    %v223 = vrot.slane %v218, %v222
    %225 = vmatprep.subr.mxu0 0.0
    %226 = vmatpush1.msra.mxu0 %v186
    %227 = vmatprep.subr.mxu0 0.0
    %228 = vmatpush1.msra.mxu0 %v187
    %229 = vmatprep.subr.mxu0 0.0
    %230 = vmatpush1.msra.mxu0 %v188
    %231 = vmatprep.subr.mxu0 0.0
    %232 = vmatpush1.msra.mxu0 %v189
    %233 = vmatprep.subr.mxu0 0.0
    %234 = vmatpush1.msra.mxu0 %v190
    %235 = vmatprep.subr.mxu0 0.0
    %236 = vmatpush1.msra.mxu0 %v191
    %237 = vmatprep.subr.mxu0 0.0
    %238 = vmatpush1.msra.mxu0 %v192
    %239 = vmatprep.subr.mxu0 0.0
    %240 = vmatpush1.msra.mxu0 %v193
    %241 = vmatprep.subr.mxu0 0.0
    %242 = vmatpush1.msra.mxu0 %v194
    %243 = vmatprep.subr.mxu0 0.0
    %244 = vmatpush1.msra.mxu0 %v195
    %245 = vmatprep.subr.mxu0 0.0
    %246 = vmatpush1.msra.mxu0 %v196
    %247 = vmatprep.subr.mxu0 0.0
    %248 = vmatpush1.msra.mxu0 %v197
    %249 = vmatprep.subr.mxu0 0.0
    %250 = vmatpush1.msra.mxu0 %v198
    %251 = vmatprep.subr.mxu0 0.0
    %252 = vmatpush1.msra.mxu0 %v199
    %253 = vmatprep.subr.mxu0 0.0
    %254 = vmatpush1.msra.mxu0 %v200
    %255 = vmatprep.subr.mxu0 0.0
    %256 = vmatpush1.msra.mxu0 %v201
    %257 = vmatprep.subr.mxu0 0.0
    %258 = vmatpush1.msra.mxu0 %v202
    %259 = vmatprep.subr.mxu0 0.0
    %260 = vmatpush1.msra.mxu0 %v203
    %261 = vmatprep.subr.mxu0 0.0
    %262 = vmatpush1.msra.mxu0 %v204
    %263 = vmatprep.subr.mxu0 0.0
    %264 = vmatpush1.msra.mxu0 %v205
    %265 = vmatprep.subr.mxu0 0.0
    %266 = vmatpush1.msra.mxu0 %v206
    %267 = vmatprep.subr.mxu0 0.0
    %268 = vmatpush1.msra.mxu0 %v207
    %269 = vmatprep.subr.mxu0 0.0
    %270 = vmatpush1.msra.mxu0 %v208
    %271 = vmatprep.subr.mxu0 0.0
    %272 = vmatpush1.msra.mxu0 %v209
    %273 = vmatprep.subr.mxu0 0.0
    %274 = vmatpush1.msra.mxu0 %v210
    %275 = vmatprep.subr.mxu0 0.0
    %276 = vmatpush1.msra.mxu0 %v211
    %277 = vmatprep.subr.mxu0 0.0
    %278 = vmatpush1.msra.mxu0 %v212
    %279 = vmatprep.subr.mxu0 0.0
    %280 = vmatpush1.msra.mxu0 %v213
    %281 = vmatprep.subr.mxu0 0.0
    %282 = vmatpush1.msra.mxu0 %v214
    %283 = vmatprep.subr.mxu0 0.0
    %284 = vmatpush1.msra.mxu0 %v215
    %285 = vmatprep.subr.mxu0 0.0
    %286 = vmatpush1.msra.mxu0 %v216
    %287 = vmatprep.subr.mxu0 0.0
    %288 = vmatpush1.msra.mxu0 %v217
    %289 = vmatprep.mubr.f32.mxu0 %v185
    %290 = vmatmul.mubr.f32.gmra.mrb[0].mxu0 %v184
    %v291 = vpop.f32.mrb[0].mxu0
    %v292 = vadd.f32 %v223, %v291
    %v293 = vpop.f32.mrb[0].mxu0
    %294 = vdwg.mxu0
    %v295 = vadd.f32 %v292, %v60
    %v296 = vmul.f32 %v295, 0.5
    %v297 = vmul.f32 %v295, 0.70710677
    %v298 = verf.f32.pop %v297
    %v299 = vadd.f32 %v298, 1.0
    %v300 = vmul.f32 %v296, %v299
    %301 = vst [vmem:[#allocation8] sm:$0xf] %v300
    // Predicated region
    $region34: #{tpu_custom_call.1} parent=1 // pred_check
      _
    $region35: #{tpu_custom_call.1} parent=1 // pred_check_branch
      %303 = sbr.rel (0) target = $region37
    $region36: #{tpu_custom_call.1} parent=1 // pred_region
      %s305 = ssub.s32 64, 64
      %306 = vsyncadd [#allocation4], %s305
      %s308 = sshll.u32 [#allocation8], 4
      %s309 = int_to_ptr.vmem [resolvable:$true] %s308
      %311 = dma.vmem_to_hbm [thread:$0]  %s309, 64, %s5, [#allocation4]
    $region37: #{tpu_custom_call.1} parent=1 // pred_fallthru
      _
    // Predicated region
    $region38: #{tpu_custom_call.1} parent=1 // pred_check
      _
    $region39: #{tpu_custom_call.1} parent=1 // pred_check_branch
      %313 = sbr.rel (0) target = $region41
    $region40: #{tpu_custom_call.1} parent=1 // pred_region
      %314 = dma.done [#allocation4], 64
    $region41: #{tpu_custom_call.1} parent=1 // pred_fallthru
      _
    %315 = vsyncpa [#allocation3], 1
    %316 = vsyncpa [#allocation6], 1
    %317 = vsyncpa [#allocation4], 1

</llo_original>
